<compile_context>
chip_gen: v5e
topology: v5e:2x2
jax: 0.10.0
libtpu: 0.0.40
codegen_flags: <defaults>
</compile_context>

<pallas_src>
import jax
import jax.numpy as jnp
from jax.experimental import pallas as pl
from jax.experimental.pallas import tpu as pltpu


_EPS = 1e-5

# Budget for the pipelined (double-buffered) x + out tiles:
#   4 * tb * tf * itemsize  <=  _VMEM_TILE_BUDget
# 24 MiB of tiles + tiny scale/shift blocks fits comfortably under the
# explicit 32 MiB scoped-VMEM limit we request below on every generation.
_VMEM_TILE_BUDGET_BYTES = 24 * 1024 * 1024
_VMEM_LIMIT_BYTES = 32 * 1024 * 1024


def _standardize_kernel(x_ref, scale_ref, shift_ref, o_ref):
    # out = x * scale + shift    (computed in f32, cast on store)
    #   scale = (var != 0) / sqrt(var + eps)   (per feature, precomputed)
    #   shift = -mean * scale                  (per feature, precomputed)
    # scale/shift are (1, tf) f32 blocks broadcast across the row tile.
    x = x_ref[...].astype(jnp.float32)
    o_ref[...] = (x * scale_ref[...] + shift_ref[...]).astype(o_ref.dtype)


def _choose_tiles(B, F, itemsize, block_rows=None):
    """Pick (tb, tf): row tile and feature tile.

    * tf is F when a minimal row tile fits the VMEM budget, otherwise the
      largest multiple of 128 that does (keeps stores lane-dense).
    * tb is the largest sublane-packing-aligned row count that fits the
      budget, but capped so the row axis splits into >= 2 grid steps whenever
      B has more than one sublane group of rows (v7x megacore sharding).
    """
    align = max(8, 32 // itemsize)  # 8 for f32, 16 for bf16, 32 for int8/fp8

    # Feature-axis tile.
    if 4 * align * F * itemsize <= _VMEM_TILE_BUDGET_BYTES:
        tf = F
    else:
        tf = (_VMEM_TILE_BUDGET_BYTES // (4 * align * itemsize) // 128) * 128
        tf = max(128, min(tf, F))

    # Row-axis tile.
    tb_max = _VMEM_TILE_BUDGET_BYTES // (4 * tf * itemsize)
    tb_max = max(align, (tb_max // align) * align)

    if block_rows is not None:
        if block_rows >= B:
            return min(B, tb_max), tf
        tb = max(align, (block_rows // align) * align)
        return min(tb, tb_max), tf

    if B <= align:
        return B, tf            # single full-extent row block
    # Split into at least two row tiles so the parallel axis can shard
    # across the two TensorCores on v7x.
    half = -(-B // 2)                       # ceil(B / 2)
    half = -(-half // align) * align        # round up to sublane packing
    return min(tb_max, half), tf


def standardize_pallas(x, bn_mean, bn_var, *, block_rows=None):
    """Pallas implementation of StandardizeLayer.forward.

    x:       (B, F)
    bn_mean: (F,) float32
    bn_var:  (F,) float32
    returns: (B, F), same dtype as x
    """
    B, F = x.shape
    assert bn_mean.shape == (F,) and bn_var.shape == (F,)

    # Fold mean / var / eps / zero-variance mask into per-feature scale+shift.
    # O(F) precompute in the wrapper; kept in float32 for accuracy even when
    # x is a low-precision dtype.
    var = bn_var.astype(jnp.float32)
    mean = bn_mean.astype(jnp.float32)
    scale = jnp.where(var != 0.0, jax.lax.rsqrt(var + _EPS), 0.0)
    shift = -mean * scale
    scale2d = scale.reshape(1, F)
    shift2d = shift.reshape(1, F)

    tb, tf = _choose_tiles(B, F, jnp.dtype(x.dtype).itemsize, block_rows)
    n_row = pl.cdiv(B, tb)
    n_feat = pl.cdiv(F, tf)

    out = pl.pallas_call(
        _standardize_kernel,
        out_shape=jax.ShapeDtypeStruct((B, F), x.dtype),
        grid_spec=pltpu.PrefetchScalarGridSpec(
            num_scalar_prefetch=0,
            grid=(n_row, n_feat),
            in_specs=[
                pl.BlockSpec((tb, tf), lambda i, j: (i, j)),   # x tile
                pl.BlockSpec((1, tf), lambda i, j: (0, j)),    # scale (f32)
                pl.BlockSpec((1, tf), lambda i, j: (0, j)),    # shift (f32)
            ],
            out_specs=pl.BlockSpec((tb, tf), lambda i, j: (i, j)),
        ),
        compiler_params=pltpu.CompilerParams(
            # Both axes are embarrassingly parallel; the row axis always has
            # >= 2 steps for multi-row batches so v7x shards it across its
            # two TensorCores.
            dimension_semantics=("parallel", "parallel"),
            vmem_limit_bytes=_VMEM_LIMIT_BYTES,
        ),
    )(x, scale2d, shift2d)

    return out


class StandardizeLayerPallas:
    """Mirror of the PyTorch StandardizeLayer with deterministic init."""

    def __init__(self, bn_stats=None, n_features=1024):
        if bn_stats is None:
            mean = jnp.zeros((n_features,), dtype=jnp.float32)
            var = jnp.ones((n_features,), dtype=jnp.float32)
            bn_stats = (mean, var)
        self.bn_stats = bn_stats

    def __call__(self, x, **kwargs):
        mean, var = self.bn_stats
        return standardize_pallas(x, mean, var, **kwargs)


def _reference(x, mean, var):
    out = (x.astype(jnp.float32) - mean) / jnp.sqrt(var + _EPS)
    out = out * (var != 0).astype(jnp.float32)
    return out.astype(x.dtype)


if __name__ == "__main__":
    key = jax.random.PRNGKey(0)
    F = 1024  # module default n_features
    kx, km, kv, kx2 = jax.random.split(key, 4)

    # Deterministic, non-trivial bn_stats: nonzero mean, some zero variances
    # (to exercise the (var != 0) mask path).
    bn_mean = jax.random.normal(km, (F,), dtype=jnp.float32) * 0.5
    bn_var = jnp.abs(jax.random.normal(kv, (F,), dtype=jnp.float32))
    bn_var = bn_var.at[::7].set(0.0)  # zero out every 7th feature's variance

    layer = StandardizeLayerPallas(bn_stats=(bn_mean, bn_var), n_features=F)

    # Case 1: small batch (single full-row tile, grid = (1, 1)).
    B1 = 8
    x1 = jax.random.normal(kx, (B1, F), dtype=jnp.float32)
    out1 = jax.block_until_ready(layer(x1))
    ref1 = _reference(x1, bn_mean, bn_var)
    assert out1.shape == (B1, F) and out1.dtype == jnp.float32
    assert jnp.allclose(out1, ref1, atol=1e-5, rtol=1e-5), "mismatch (case 1)"

    # Case 2: batch not divisible by the forced row tile -> multi-step grid
    # with a ragged, write-masked last block (no padding / slicing copies).
    B2 = 20
    x2 = jax.random.normal(kx2, (B2, F), dtype=jnp.float32)
    out2 = jax.block_until_ready(layer(x2, block_rows=8))
    ref2 = _reference(x2, bn_mean, bn_var)
    assert out2.shape == (B2, F) and out2.dtype == jnp.float32
    assert jnp.allclose(out2, ref2, atol=1e-5, rtol=1e-5), "mismatch (case 2)"

    print("KERNEL_OK")
</pallas_src>

<mosaic_0001>
module attributes {stable_mosaic.version = 11 : i64} {
  func.func @_standardize_kernel(%arg0: i32, %arg1: i32, %arg2: memref<8x1024xf32, #tpu.memory_space<vmem>>, %arg3: memref<1x1024xf32, #tpu.memory_space<vmem>>, %arg4: memref<1x1024xf32, #tpu.memory_space<vmem>>, %arg5: memref<8x1024xf32, #tpu.memory_space<vmem>>) attributes {dimension_semantics = [#tpu.dimension_semantics<parallel>, #tpu.dimension_semantics<parallel>], iteration_bounds = array<i64: 1, 1>, scalar_prefetch = 0 : i64, scratch_operands = 0 : i64, tpu.core_type = #tpu.core_type<tc>, window_params = [{transform_indices = @transform_0, window_bounds = array<i64: 8, 1024>}, {transform_indices = @transform_1, window_bounds = array<i64: 1, 1024>}, {transform_indices = @transform_2, window_bounds = array<i64: 1, 1024>}, {transform_indices = @transform_3, window_bounds = array<i64: 8, 1024>}]} {
    %c0 = arith.constant 0 : index
    %c0_0 = arith.constant 0 : index
    %0 = vector.load %arg2[%c0, %c0_0] : memref<8x1024xf32, #tpu.memory_space<vmem>>, vector<8x1024xf32>
    %c0_1 = arith.constant 0 : index
    %c0_2 = arith.constant 0 : index
    %1 = vector.load %arg3[%c0_1, %c0_2] : memref<1x1024xf32, #tpu.memory_space<vmem>>, vector<1x1024xf32>
    %2 = vector.broadcast %1 : vector<1x1024xf32> to vector<8x1024xf32>
    %3 = arith.mulf %0, %2 : vector<8x1024xf32>
    %c0_3 = arith.constant 0 : index
    %c0_4 = arith.constant 0 : index
    %4 = vector.load %arg4[%c0_3, %c0_4] : memref<1x1024xf32, #tpu.memory_space<vmem>>, vector<1x1024xf32>
    %5 = vector.broadcast %4 : vector<1x1024xf32> to vector<8x1024xf32>
    %6 = arith.addf %3, %5 : vector<8x1024xf32>
    %c0_5 = arith.constant 0 : index
    %c0_6 = arith.constant 0 : index
    %7 = vector.load %arg5[%c0_5, %c0_6] : memref<8x1024xf32, #tpu.memory_space<vmem>>, vector<8x1024xf32>
    tpu.vector_store %arg5[%c0_5, %c0_6], %6 {strides = array<i32>} : memref<8x1024xf32, #tpu.memory_space<vmem>>, vector<8x1024xf32>,
    return
  }
  func.func @transform_0(%arg0: i32, %arg1: i32) -> (i32, i32) {
    %c0_i32 = arith.constant 0 : i32
    return %arg0, %arg1 : i32, i32
  }
  func.func @transform_1(%arg0: i32, %arg1: i32) -> (i32, i32) {
    %c0_i32 = arith.constant 0 : i32
    %c0_i32_0 = arith.constant 0 : i32
    return %c0_i32, %arg1 : i32, i32
  }
  func.func @transform_2(%arg0: i32, %arg1: i32) -> (i32, i32) {
    %c0_i32 = arith.constant 0 : i32
    %c0_i32_0 = arith.constant 0 : i32
    return %c0_i32, %arg1 : i32, i32
  }
  func.func @transform_3(%arg0: i32, %arg1: i32) -> (i32, i32) {
    %c0_i32 = arith.constant 0 : i32
    return %arg0, %arg1 : i32, i32
  }
}

</mosaic_0001>

<llo_original>
// kernel: tpu_custom_call.1
$region0: #{tpu_custom_call.1}
  #allocation0 [shape = 'u32[]', space=smem, size = 0x4, offset = 0x4, fixed_abs, tag = 'smem constant byte address 0x4 - core index']
  #allocation1 [shape = 'u32[72,128]{1,0:T(1,128)}', space=vmem, size = 0x9000, scoped, tag = 'internal scratch']
  %s0 = inlined_call_operand.hbm [shape: f32[8,1024], index: 0, kind: input, shape index: {}]
  %s1 = inlined_call_operand.hbm [shape: f32[1,1024], index: 1, kind: input, shape index: {}]
  %s2 = inlined_call_operand.hbm [shape: f32[1,1024], index: 2, kind: input, shape index: {}]
  %s3 = inlined_call_operand.hbm [shape: f32[8,1024], index: 3, kind: output, shape index: {}]
  %s4 = sld [smem:[#allocation0]]
  $region34: #{tpu_custom_call.1} parent=0
    _
  %s6 = ssub.s32 1, %s4
  %s7 = scalar_select 0, %s6, %s4
  $region1: #{tpu_custom_call.1} parent=0
    #allocation2 [shape = 'u8[32768]{0}', space=vmem, size = 0x8000, scoped, tag = 'input window, operand 0, single buffered']
    #allocation3 [shape = 's32[1]{0}', space=sflag, size = 0x4, scoped, tag = 'scoped memory for tpu_custom_call.1']
    #allocation4 [shape = 's32[1]{0}', space=sflag, size = 0x4, scoped, tag = 'scoped memory for tpu_custom_call.1']
    #allocation5 [shape = 'u8[4096]{0}', space=vmem, size = 0x1000, scoped, tag = 'input window, operand 1, single buffered']
    #allocation6 [shape = 's32[1]{0}', space=sflag, size = 0x4, scoped, tag = 'scoped memory for tpu_custom_call.1']
    #allocation7 [shape = 'u8[4096]{0}', space=vmem, size = 0x1000, scoped, tag = 'input window, operand 2, single buffered']
    #allocation8 [shape = 'u8[32768]{0}', space=vmem, size = 0x8000, scoped, tag = 'output window, operand 0, single buffered']
    %8 = vsyncpa [#allocation3], 0
    %9 = vsyncpa [#allocation6], 0
    %10 = vsyncpa [#allocation4], 0
    // Predicated region
    $region2: #{tpu_custom_call.1} parent=1 // pred_check
      _
    $region3: #{tpu_custom_call.1} parent=1 // pred_check_branch
      %12 = sbr.rel (0) target = $region5
    $region4: #{tpu_custom_call.1} parent=1 // pred_region
      %14 = vsyncadd [#allocation3], 0
      %s16 = sshll.u32 %s0, 4
      %s17 = int_to_ptr.hbm [resolvable:$true] %s16
      %s18 = sshll.u32 [#allocation2], 4
      %s19 = int_to_ptr.vmem [resolvable:$true] %s18
      %21 = dma.hbm_to_vmem [thread:$0]  %s17, 1024, %s19, [#allocation3]
    $region5: #{tpu_custom_call.1} parent=1 // pred_fallthru
      _
    // Predicated region
    $region6: #{tpu_custom_call.1} parent=1 // pred_check
      _
    $region7: #{tpu_custom_call.1} parent=1 // pred_check_branch
      %23 = sbr.rel (0) target = $region9
    $region8: #{tpu_custom_call.1} parent=1 // pred_region
      %25 = vsyncadd [#allocation6], 0
      %s27 = sshll.u32 %s1, 4
      %s28 = int_to_ptr.hbm [resolvable:$true] %s27
      %s29 = sshll.u32 [#allocation5], 4
      %s30 = int_to_ptr.vmem [resolvable:$true] %s29
      %32 = dma.hbm_to_vmem [thread:$0]  %s28, 128, %s30, [#allocation6]
    $region9: #{tpu_custom_call.1} parent=1 // pred_fallthru
      _
    // Predicated region
    $region10: #{tpu_custom_call.1} parent=1 // pred_check
      _
    $region11: #{tpu_custom_call.1} parent=1 // pred_check_branch
      %34 = sbr.rel (0) target = $region13
    $region12: #{tpu_custom_call.1} parent=1 // pred_region
      %36 = vsyncadd [#allocation6], 0
      %s38 = sshll.u32 %s2, 4
      %s39 = int_to_ptr.hbm [resolvable:$true] %s38
      %s40 = sshll.u32 [#allocation7], 4
      %s41 = int_to_ptr.vmem [resolvable:$true] %s40
      %43 = dma.hbm_to_vmem [thread:$0]  %s39, 128, %s41, [#allocation6]
    $region13: #{tpu_custom_call.1} parent=1 // pred_fallthru
      _
    // Predicated region
    $region14: #{tpu_custom_call.1} parent=1 // pred_check
      _
    $region15: #{tpu_custom_call.1} parent=1 // pred_check_branch
      %45 = sbr.rel (0) target = $region17
    $region16: #{tpu_custom_call.1} parent=1 // pred_region
      %47 = dma.done [#allocation3], 1024
    $region17: #{tpu_custom_call.1} parent=1 // pred_fallthru
      _
    // Predicated region
    $region18: #{tpu_custom_call.1} parent=1 // pred_check
      _
    $region19: #{tpu_custom_call.1} parent=1 // pred_check_branch
      %49 = sbr.rel (0) target = $region21
    $region20: #{tpu_custom_call.1} parent=1 // pred_region
      %51 = dma.done [#allocation6], 128
    $region21: #{tpu_custom_call.1} parent=1 // pred_fallthru
      _
    // Predicated region
    $region22: #{tpu_custom_call.1} parent=1 // pred_check
      _
    $region23: #{tpu_custom_call.1} parent=1 // pred_check_branch
      %53 = sbr.rel (0) target = $region25
    $region24: #{tpu_custom_call.1} parent=1 // pred_region
      %55 = dma.done [#allocation6], 128
    $region25: #{tpu_custom_call.1} parent=1 // pred_fallthru
      _
    %v56 = vld [vmem:[#allocation2] sm:$0xff]
    %v57 = vld [vmem:[#allocation2 + $0x8] sm:$0xff]
    %v58 = vld [vmem:[#allocation2 + $0x10] sm:$0xff]
    %v59 = vld [vmem:[#allocation2 + $0x18] sm:$0xff]
    %v60 = vld [vmem:[#allocation2 + $0x20] sm:$0xff]
    %v61 = vld [vmem:[#allocation2 + $0x28] sm:$0xff]
    %v62 = vld [vmem:[#allocation2 + $0x30] sm:$0xff]
    %v63 = vld [vmem:[#allocation2 + $0x38] sm:$0xff]
    %v64 = vld [vmem:[#allocation5] sm:$0xff]
    %v66 = vperm.slane %v64, 0
    %v67 = vperm.slane %v64, 1
    %v68 = vperm.slane %v64, 2
    %v69 = vperm.slane %v64, 3
    %v70 = vperm.slane %v64, 4
    %v71 = vperm.slane %v64, 5
    %v72 = vperm.slane %v64, 6
    %v73 = vperm.slane %v64, 7
    %v82 = vmul.f32 %v56, %v66
    %v83 = vmul.f32 %v57, %v67
    %v84 = vmul.f32 %v58, %v68
    %v85 = vmul.f32 %v59, %v69
    %v86 = vmul.f32 %v60, %v70
    %v87 = vmul.f32 %v61, %v71
    %v88 = vmul.f32 %v62, %v72
    %v89 = vmul.f32 %v63, %v73
    %v90 = vld [vmem:[#allocation7] sm:$0xff]
    %v92 = vperm.slane %v90, 0
    %v93 = vperm.slane %v90, 1
    %v94 = vperm.slane %v90, 2
    %v95 = vperm.slane %v90, 3
    %v96 = vperm.slane %v90, 4
    %v97 = vperm.slane %v90, 5
    %v98 = vperm.slane %v90, 6
    %v99 = vperm.slane %v90, 7
    %v108 = vadd.f32 %v82, %v92
    %v109 = vadd.f32 %v83, %v93
    %v110 = vadd.f32 %v84, %v94
    %v111 = vadd.f32 %v85, %v95
    %v112 = vadd.f32 %v86, %v96
    %v113 = vadd.f32 %v87, %v97
    %v114 = vadd.f32 %v88, %v98
    %v115 = vadd.f32 %v89, %v99
    %116 = vst [vmem:[#allocation8] sm:$0xff] %v108
    %117 = vst [vmem:[#allocation8 + $0x8] sm:$0xff] %v109
    %118 = vst [vmem:[#allocation8 + $0x10] sm:$0xff] %v110
    %119 = vst [vmem:[#allocation8 + $0x18] sm:$0xff] %v111
    %120 = vst [vmem:[#allocation8 + $0x20] sm:$0xff] %v112
    %121 = vst [vmem:[#allocation8 + $0x28] sm:$0xff] %v113
    %122 = vst [vmem:[#allocation8 + $0x30] sm:$0xff] %v114
    %123 = vst [vmem:[#allocation8 + $0x38] sm:$0xff] %v115
    // Predicated region
    $region26: #{tpu_custom_call.1} parent=1 // pred_check
      _
    $region27: #{tpu_custom_call.1} parent=1 // pred_check_branch
      %125 = sbr.rel (0) target = $region29
    $region28: #{tpu_custom_call.1} parent=1 // pred_region
      %127 = vsyncadd [#allocation4], 0
      %s129 = sshll.u32 [#allocation8], 4
      %s130 = int_to_ptr.vmem [resolvable:$true] %s129
      %s131 = sshll.u32 %s3, 4
      %s132 = int_to_ptr.hbm [resolvable:$true] %s131
      %134 = dma.vmem_to_hbm [thread:$0]  %s130, 1024, %s132, [#allocation4]
    $region29: #{tpu_custom_call.1} parent=1 // pred_fallthru
      _
    // Predicated region
    $region30: #{tpu_custom_call.1} parent=1 // pred_check
      _
    $region31: #{tpu_custom_call.1} parent=1 // pred_check_branch
      %136 = sbr.rel (0) target = $region33
    $region32: #{tpu_custom_call.1} parent=1 // pred_region
      %138 = dma.done [#allocation4], 1024
    $region33: #{tpu_custom_call.1} parent=1 // pred_fallthru
      _
    %139 = vsyncpa [#allocation3], 1
    %140 = vsyncpa [#allocation6], 1
    %141 = vsyncpa [#allocation4], 1

</llo_original>
